<compile_context>
chip_gen: v5e
topology: v5e:2x2
jax: 0.10.0
libtpu: 0.0.40
codegen_flags: <defaults>
</compile_context>

<pallas_src>
import functools

import jax
import jax.numpy as jnp
from jax.experimental import pallas as pl
from jax.experimental.pallas import tpu as pltpu


def _topk_gate_kernel(x_ref, w_ref, idx_ref, gate_ref, *, k):
    # x_ref: (TS, D) in the caller's dtype; w_ref: (E, D) f32 (resident).
    x = x_ref[...].astype(jnp.float32)       # exact upcast == module's input.float()
    w = w_ref[...]

    # logits^T: (E, TS) = W @ X^T, contracting on D.  Same "NT" contraction as
    # q @ k^T in attention, so the transpose is fused into the MXU op.
    logits = jax.lax.dot_general(
        w, x, dimension_numbers=(((1,), (1,)), ((), ())),
        preferred_element_type=jnp.float32)

    num_experts = logits.shape[0]

    # One cross-sublane max, reused for both the softmax shift and the argmax.
    m = jnp.max(logits, axis=0, keepdims=True)                # (1, TS)
    e = jnp.exp(logits - m)                                   # (E, TS)
    # Normalize only the selected values: a (1, TS) reciprocal instead of an
    # (E, TS) divide.  approx=True only for k=2, where the common factor
    # cancels exactly in the top-2 renormalization.
    inv = pl.reciprocal(jnp.sum(e, axis=0, keepdims=True), approx=(k == 2))

    # First-occurrence argmax over the expert (sublane) axis, done in f32.
    iota = jax.lax.broadcasted_iota(jnp.int32, logits.shape, 0).astype(jnp.float32)
    sentinel = jnp.float32(num_experts)
    idx1 = jnp.min(jnp.where(logits == m, iota, sentinel), axis=0, keepdims=True)
    mask1 = iota == idx1
    g1 = jnp.sum(jnp.where(mask1, e, 0.0), axis=0, keepdims=True) * inv

    if k == 1:
        idx_ref[0, 0:1, :] = idx1.astype(jnp.int32)
        gate_ref[0, 0:1, :] = g1
        return

    # Second expert: mask out the winner and repeat.
    logits2 = jnp.where(mask1, jnp.float32(-jnp.inf), logits)
    m2 = jnp.max(logits2, axis=0, keepdims=True)
    idx2 = jnp.min(jnp.where(logits2 == m2, iota, sentinel), axis=0, keepdims=True)
    mask2 = iota == idx2
    g2 = jnp.sum(jnp.where(mask2, e, 0.0), axis=0, keepdims=True) * inv

    # Renormalize the two gates (clamp at f32 eps, like torch.finfo(f32).eps).
    eps = jnp.float32(jnp.finfo(jnp.float32).eps)
    inv_d = 1.0 / jnp.maximum(g1 + g2, eps)

    idx_ref[0, 0:1, :] = idx1.astype(jnp.int32)
    idx_ref[0, 1:2, :] = idx2.astype(jnp.int32)
    gate_ref[0, 0:1, :] = g1 * inv_d
    gate_ref[0, 1:2, :] = g2 * inv_d


def _pick_token_tile(S, D, itemsize, token_tile):
    """Largest token tile <= token_tile that is sublane-aligned and VMEM-safe."""
    # Sublane granule: 8 rows for 32-bit, 16 for 16-bit, 32 for 8-bit dtypes.
    granule = 8 * max(1, 4 // itemsize)
    # Cap the double-buffered x tile at ~16 MiB so it fits v7x's 64 MiB VMEM too.
    vmem_cap_ts = max(granule, ((16 << 20) // (2 * D * itemsize)) // granule * granule)
    tile = min(token_tile, vmem_cap_ts)
    if S <= tile:
        return S                 # single tile: block == full array, no alignment needed
    return max(granule, (tile // granule) * granule)


@functools.partial(jax.jit, static_argnames=("k", "token_tile"))
def topk_gate(x, wg, *, k=1, token_tile=1024):
    """TopKGate.forward (eval mode).

    Args:
      x:  [..., D] tokens in any float dtype (bf16 recommended: halves the
          HBM read; the exact f32 upcast happens inside the kernel).
      wg: [E, D]   gate weight in PyTorch nn.Linear layout.
      k:  1 or 2.

    Returns:
      (indices_s, gates_s): lists of length k; each element is flattened to
      [S] over the token axis (int32 expert index / f32 gate value).
    """
    if k not in (1, 2):
        raise ValueError("Only top-1 and top-2 gatings are supported.")
    D = x.shape[-1]
    E, Dw = wg.shape
    if Dw != D:
        raise ValueError("wg must have shape [num_experts, model_dim]")
    # TODO(synk): training-only noisy_gate_policy branches (Jitter / RSample /
    # vmoe) are not implemented; this is the eval forward path.

    x2 = x.reshape(-1, D)                  # keep native dtype (no wrapper f32 copy)
    wg = wg.astype(jnp.float32)            # cast the tiny resident weight once
    S = x2.shape[0]
    itemsize = x2.dtype.itemsize

    TS = _pick_token_tile(S, D, itemsize, token_tile)
    S_pad = -(-S // TS) * TS
    if S_pad != S:                         # zero-pad the ragged tail tile
        x2 = jnp.pad(x2, ((0, S_pad - S), (0, 0)))
    n_tiles = S_pad // TS

    out_shape = (
        jax.ShapeDtypeStruct((n_tiles, k, TS), jnp.int32),    # expert indices
        jax.ShapeDtypeStruct((n_tiles, k, TS), jnp.float32),  # gate values
    )
    out_specs = (
        pl.BlockSpec((1, k, TS), lambda i: (i, 0, 0)),
        pl.BlockSpec((1, k, TS), lambda i: (i, 0, 0)),
    )
    in_specs = [
        pl.BlockSpec((TS, D), lambda i: (i, 0)),   # streamed token tile
        pl.BlockSpec((E, D), lambda i: (0, 0)),    # resident gate weight
    ]

    vmem_need = (2 * TS * D * itemsize       # x, double-buffered
                 + 2 * E * D * 4             # weight
                 + 2 * 2 * k * TS * 4)       # idx + gate outputs, double-buffered
    vmem_limit = int(min(max(vmem_need + (8 << 20), 32 << 20), 48 << 20))

    idx_out, gate_out = pl.pallas_call(
        functools.partial(_topk_gate_kernel, k=k),
        out_shape=out_shape,
        grid_spec=pltpu.PrefetchScalarGridSpec(
            num_scalar_prefetch=0,
            grid=(n_tiles,),
            in_specs=in_specs,
            out_specs=out_specs,
        ),
        compiler_params=pltpu.CompilerParams(
            dimension_semantics=("parallel",),   # shards tiles across v7x's 2 TCs
            vmem_limit_bytes=vmem_limit,
        ),
    )(x2, wg)

    # (n_tiles, k, TS) -> k arrays of shape [S] in global token order.
    idx_out = jnp.swapaxes(idx_out, 0, 1).reshape(k, S_pad)[:, :S]
    gate_out = jnp.swapaxes(gate_out, 0, 1).reshape(k, S_pad)[:, :S]
    return [idx_out[j] for j in range(k)], [gate_out[j] for j in range(k)]


def _reference(x, wg, k):
    """Pure-JAX reference mirroring TopKGate.top{1,2}gating (eval mode)."""
    x2 = x.reshape(-1, x.shape[-1]).astype(jnp.float32)
    logits = x2 @ wg.astype(jnp.float32).T
    gates = jax.nn.softmax(logits, axis=-1)
    E = logits.shape[-1]
    idx1 = jnp.argmax(logits, axis=-1)
    g1 = jnp.sum(gates * jax.nn.one_hot(idx1, E), axis=-1)
    if k == 1:
        return [idx1], [g1]
    logits2 = jnp.where(jax.nn.one_hot(idx1, E, dtype=bool), -jnp.inf, logits)
    idx2 = jnp.argmax(logits2, axis=-1)
    g2 = jnp.sum(gates * jax.nn.one_hot(idx2, E), axis=-1)
    denom = jnp.maximum(g1 + g2, jnp.finfo(jnp.float32).eps)
    return [idx1, idx2], [g1 / denom, g2 / denom]


if __name__ == "__main__":
    key = jax.random.PRNGKey(0)
    kx, kw = jax.random.split(key)

    batch, seq, model_dim, num_experts = 2, 128, 32, 8
    # tokens kept in bf16 end-to-end (exercises the halved-HBM-read path)
    x = jax.random.normal(
        kx, (batch, seq, model_dim), dtype=jnp.float32).astype(jnp.bfloat16)
    # PyTorch Linear(model_dim, num_experts).weight layout: [E, D]
    wg = jax.random.normal(
        kw, (num_experts, model_dim), dtype=jnp.float32) * (model_dim ** -0.5)

    ok = True
    # token_tile=128: exact multi-tile grid; token_tile=96: exercises the
    # zero-padded ragged tail tile (S=256 -> 3 tiles of 96).
    for k, tt in ((1, 128), (2, 128), (2, 96)):
        indices_s, gates_s = topk_gate(x, wg, k=k, token_tile=tt)
        jax.block_until_ready(gates_s[-1])
        ref_idx, ref_g = _reference(x, wg, k)
        for a, b in zip(indices_s, ref_idx):
            # allow <=1 token of disagreement from MXU-rounding near-ties
            ok &= int(jnp.sum(a != b.astype(jnp.int32))) <= 1
        for a, b in zip(gates_s, ref_g):
            ok &= bool(jnp.allclose(a, b, atol=2e-5, rtol=2e-5))

    if ok:
        print("KERNEL_OK")
    else:
        print("MISMATCH")
</pallas_src>

<mosaic_0001>
module attributes {stable_mosaic.version = 11 : i64} {
  func.func @_topk_gate_kernel(%arg0: i32, %arg1: memref<128x32xbf16, #tpu.memory_space<vmem>>, %arg2: memref<8x32xf32, #tpu.memory_space<vmem>>, %arg3: memref<1x1x128xi32, #tpu.memory_space<vmem>>, %arg4: memref<1x1x128xf32, #tpu.memory_space<vmem>>) attributes {dimension_semantics = [#tpu.dimension_semantics<parallel>], iteration_bounds = array<i64: 2>, scalar_prefetch = 0 : i64, scratch_operands = 0 : i64, tpu.core_type = #tpu.core_type<tc>, window_params = [{transform_indices = @transform_0, window_bounds = array<i64: 128, 32>}, {pipeline_mode = #tpu.pipeline_mode<synchronous>, transform_indices = @transform_1, window_bounds = array<i64: 8, 32>}, {transform_indices = @transform_2, window_bounds = array<i64: 1, 1, 128>}, {transform_indices = @transform_3, window_bounds = array<i64: 1, 1, 128>}]} {
    %c0 = arith.constant 0 : index
    %c0_0 = arith.constant 0 : index
    %0 = vector.load %arg1[%c0, %c0_0] : memref<128x32xbf16, #tpu.memory_space<vmem>>, vector<128x32xbf16>
    %1 = arith.extf %0 : vector<128x32xbf16> to vector<128x32xf32>
    %c0_1 = arith.constant 0 : index
    %c0_2 = arith.constant 0 : index
    %2 = vector.load %arg2[%c0_1, %c0_2] : memref<8x32xf32, #tpu.memory_space<vmem>>, vector<8x32xf32>
    %cst = arith.constant dense<0.000000e+00> : vector<8x128xf32>
    %3 = tpu.matmul %2, %1, %cst {dimension_numbers = #tpu.dot_dimension_numbers<[1], [1], [0], [0], [0, 0, 1, 0], [], []>} : vector<8x32xf32>, vector<128x32xf32>, vector<8x128xf32> -> vector<8x128xf32>
    %cst_3 = arith.constant dense<0xFF800000> : vector<128xf32>
    %4 = vector.multi_reduction <maximumf>, %3, %cst_3 [0] : vector<8x128xf32> to vector<128xf32>
    %5 = vector.shape_cast %4 : vector<128xf32> to vector<1x128xf32>
    %6 = vector.broadcast %5 : vector<1x128xf32> to vector<8x128xf32>
    %7 = arith.subf %3, %6 : vector<8x128xf32>
    %8 = math.exp %7 : vector<8x128xf32>
    %cst_4 = arith.constant dense<0.000000e+00> : vector<128xf32>
    %9 = vector.multi_reduction <add>, %8, %cst_4 [0] : vector<8x128xf32> to vector<128xf32>
    %10 = vector.shape_cast %9 : vector<128xf32> to vector<1x128xf32>
    %11 = tpu.reciprocal %10 : vector<1x128xf32> -> vector<1x128xf32>
    %12 = tpu.iota {dimensions = array<i32: 0>} : vector<8x128xi32>
    %13 = arith.sitofp %12 : vector<8x128xi32> to vector<8x128xf32>
    %14 = vector.broadcast %5 : vector<1x128xf32> to vector<8x128xf32>
    %15 = arith.cmpf oeq, %3, %14 : vector<8x128xf32>
    %cst_5 = arith.constant 8.000000e+00 : f32
    %16 = vector.broadcast %cst_5 : f32 to vector<8x128xf32>
    %17 = arith.select %15, %13, %16 : vector<8x128xi1>, vector<8x128xf32>
    %cst_6 = arith.constant dense<0x7F800000> : vector<128xf32>
    %18 = vector.multi_reduction <minimumf>, %17, %cst_6 [0] : vector<8x128xf32> to vector<128xf32>
    %19 = vector.shape_cast %18 : vector<128xf32> to vector<1x128xf32>
    %20 = vector.broadcast %19 : vector<1x128xf32> to vector<8x128xf32>
    %21 = arith.cmpf oeq, %13, %20 : vector<8x128xf32>
    %cst_7 = arith.constant 0.000000e+00 : f32
    %22 = vector.broadcast %cst_7 : f32 to vector<8x128xf32>
    %23 = arith.select %21, %8, %22 : vector<8x128xi1>, vector<8x128xf32>
    %cst_8 = arith.constant dense<0.000000e+00> : vector<128xf32>
    %24 = vector.multi_reduction <add>, %23, %cst_8 [0] : vector<8x128xf32> to vector<128xf32>
    %25 = vector.shape_cast %24 : vector<128xf32> to vector<1x128xf32>
    %26 = arith.mulf %25, %11 : vector<1x128xf32>
    %27 = arith.fptosi %19 : vector<1x128xf32> to vector<1x128xi32>
    %c0_9 = arith.constant 0 : index
    %c0_10 = arith.constant 0 : index
    %c0_11 = arith.constant 0 : index
    %28 = vector.load %arg3[%c0_9, %c0_10, %c0_11] : memref<1x1x128xi32, #tpu.memory_space<vmem>>, vector<1x1x128xi32>
    %29 = vector.shape_cast %28 : vector<1x1x128xi32> to vector<1x128xi32>
    %30 = vector.shape_cast %27 : vector<1x128xi32> to vector<1x1x128xi32>
    tpu.vector_store %arg3[%c0_9, %c0_10, %c0_11], %30 {strides = array<i32>} : memref<1x1x128xi32, #tpu.memory_space<vmem>>, vector<1x1x128xi32>,
    %c0_12 = arith.constant 0 : index
    %c0_13 = arith.constant 0 : index
    %c0_14 = arith.constant 0 : index
    %31 = vector.load %arg4[%c0_12, %c0_13, %c0_14] : memref<1x1x128xf32, #tpu.memory_space<vmem>>, vector<1x1x128xf32>
    %32 = vector.shape_cast %31 : vector<1x1x128xf32> to vector<1x128xf32>
    %33 = vector.shape_cast %26 : vector<1x128xf32> to vector<1x1x128xf32>
    tpu.vector_store %arg4[%c0_12, %c0_13, %c0_14], %33 {strides = array<i32>} : memref<1x1x128xf32, #tpu.memory_space<vmem>>, vector<1x1x128xf32>,
    return
  }
  func.func @transform_0(%arg0: i32) -> (i32, i32) {
    %c0_i32 = arith.constant 0 : i32
    %c0_i32_0 = arith.constant 0 : i32
    return %arg0, %c0_i32 : i32, i32
  }
  func.func @transform_1(%arg0: i32) -> (i32, i32) {
    %c0_i32 = arith.constant 0 : i32
    %c0_i32_0 = arith.constant 0 : i32
    %c0_i32_1 = arith.constant 0 : i32
    return %c0_i32, %c0_i32_0 : i32, i32
  }
  func.func @transform_2(%arg0: i32) -> (i32, i32, i32) {
    %c0_i32 = arith.constant 0 : i32
    %c0_i32_0 = arith.constant 0 : i32
    %c0_i32_1 = arith.constant 0 : i32
    return %arg0, %c0_i32, %c0_i32_0 : i32, i32, i32
  }
  func.func @transform_3(%arg0: i32) -> (i32, i32, i32) {
    %c0_i32 = arith.constant 0 : i32
    %c0_i32_0 = arith.constant 0 : i32
    %c0_i32_1 = arith.constant 0 : i32
    return %arg0, %c0_i32, %c0_i32_0 : i32, i32, i32
  }
}

</mosaic_0001>

<llo_original>
// kernel: topk_gate.1
$region0: #{topk_gate.1}
  #allocation0 [shape = 'u32[]', space=smem, size = 0x4, offset = 0x4, fixed_abs, tag = 'smem constant byte address 0x4 - core index']
  #allocation1 [shape = 'u32[72,128]{1,0:T(1,128)}', space=vmem, size = 0x9000, scoped, tag = 'internal scratch']
  %s0 = inlined_call_operand.vmem [shape: bf16[256,32], index: 0, kind: input, shape index: {}]
  %s1 = inlined_call_operand.vmem [shape: f32[8,32], index: 1, kind: input, shape index: {}]
  %s2 = inlined_call_operand.hbm [shape: s32[2,1,128], index: 2, kind: output, shape index: {0}]
  %s3 = inlined_call_operand.hbm [shape: f32[2,1,128], index: 3, kind: output, shape index: {1}]
  %4 = xla_tuple %s2, %s3
  %s5 = sld [smem:[#allocation0]]
  $region49: #{topk_gate.1} parent=0
    _
  %s7 = ssub.s32 1, %s5
  %s8 = scalar_select 0, %s7, %s5
  $region1: #{topk_gate.1} parent=0
    #allocation2 [shape = 'u8[1024]{0}', space=vmem, size = 0x400, scoped, tag = 'output window, operand 0']
    #allocation3 [shape = 's32[2]{0}', space=sflag, size = 0x8, scoped, tag = 'scoped memory for topk_gate.1']
    #allocation4 [shape = 'u8[1024]{0}', space=vmem, size = 0x400, scoped, tag = 'output window, operand 1']
    #allocation5 [shape = 's32[2]{0}', space=sflag, size = 0x8, scoped, tag = 'scoped memory for topk_gate.1']
    %9 = vsyncpa [#allocation3], 0
    %s10 = scalar_lea.sflag [#allocation3], 1
    %11 = vsyncpa %s10, 0
    %12 = vsyncpa [#allocation5], 0
    %s13 = scalar_lea.sflag [#allocation5], 1
    %14 = vsyncpa %s13, 0
    loop: start=0, step=1, limit=4
    $region2: #{topk_gate.1} parent=1 // loop_pre_header
      _
    $region3: #{topk_gate.1} parent=1 // loop_header
      %s16 = sphi 0, %s20
      %p17 = scmp.ge.s32.totalorder %s16, 4
      %s26 = sphi 0, %s28
      %s29 = sphi 0, %s26
      %s30 = sphi 0, %s29
      %s46 = sphi 0, %s30
      %s50 = sphi 0, %s50
      %s52 = sphi 0, %s50
      %s53 = sphi 0, %s52
      %s67 = sphi 0, %s53
      %s73 = sphi 0, %s75
      %s76 = sphi 0, %s73
      %s77 = sphi 0, %s76
      %s93 = sphi 0, %s77
      %s99 = sphi 0, %s101
      %s102 = sphi 0, %s99
      %s103 = sphi 0, %s102
      %s119 = sphi 0, %s103
    $region4: #{topk_gate.1} parent=1 // loop_header_branch
      %19 = sbr.rel (%p17) target = $region8
    $region5: #{topk_gate.1} parent=1 // loop_body
      %s21 = ssub.s32 %s16, 1
      %s22 = ssub.s32 %s16, 2
      %s23 = sadd.s32 %s16, 1
      %s24 = ssub.s32 %s16, %s23
      %p25 = scmp.eq.s32.totalorder %s24, 0
      %s27 = sadd.s32 %s26, 1
      %s28 = scalar_select %p25, %s26, %s27
      %p31 = pneg %p25
      %p32 = scmp.eq.s32.totalorder %s16, 1
      %p33 = por %p31, %p32
      %p34 = scmp.ne.s32.totalorder %s26, %s29
      %p35 = scmp.eq.s32.totalorder %s16, 0
      %p36 = por %p34, %p35
      %p37 = scmp.ne.s32.totalorder %s26, %s29
      %p38 = scmp.eq.s32.totalorder %s21, 1
      %p39 = por %p37, %p38
      %p40 = scmp.ne.s32.totalorder %s29, %s30
      %p41 = scmp.eq.s32.totalorder %s21, 0
      %p42 = por %p40, %p41
      %p43 = scmp.ne.s32.totalorder %s29, %s30
      %p44 = scmp.eq.s32.totalorder %s22, 1
      %p45 = por %p43, %p44
      %p47 = scmp.ne.s32.totalorder %s30, %s46
      %p48 = scmp.eq.s32.totalorder %s22, 0
      %p49 = por %p47, %p48
      %s51 = sadd.s32 %s50, 1
      %p54 = scmp.eq.s32.totalorder %s16, 1
      %p55 = scmp.ne.s32.totalorder %s50, %s52
      %p56 = scmp.eq.s32.totalorder %s16, 0
      %p57 = por %p55, %p56
      %p58 = scmp.ne.s32.totalorder %s50, %s52
      %p59 = scmp.eq.s32.totalorder %s21, 1
      %p60 = por %p58, %p59
      %p61 = scmp.ne.s32.totalorder %s52, %s53
      %p62 = scmp.eq.s32.totalorder %s21, 0
      %p63 = por %p61, %p62
      %p64 = scmp.ne.s32.totalorder %s52, %s53
      %p65 = scmp.eq.s32.totalorder %s22, 1
      %p66 = por %p64, %p65
      %p68 = scmp.ne.s32.totalorder %s53, %s67
      %p69 = scmp.eq.s32.totalorder %s22, 0
      %p70 = por %p68, %p69
      %s71 = ssub.s32 %s16, %s23
      %p72 = scmp.eq.s32.totalorder %s71, 0
      %s74 = sadd.s32 %s73, 1
      %s75 = scalar_select %p72, %s73, %s74
      %p78 = pneg %p72
      %p79 = scmp.eq.s32.totalorder %s16, 1
      %p80 = por %p78, %p79
      %p81 = scmp.ne.s32.totalorder %s73, %s76
      %p82 = scmp.eq.s32.totalorder %s16, 0
      %p83 = por %p81, %p82
      %p84 = scmp.ne.s32.totalorder %s73, %s76
      %p85 = scmp.eq.s32.totalorder %s21, 1
      %p86 = por %p84, %p85
      %p87 = scmp.ne.s32.totalorder %s76, %s77
      %p88 = scmp.eq.s32.totalorder %s21, 0
      %p89 = por %p87, %p88
      %p90 = scmp.ne.s32.totalorder %s76, %s77
      %p91 = scmp.eq.s32.totalorder %s22, 1
      %p92 = por %p90, %p91
      %p94 = scmp.ne.s32.totalorder %s77, %s93
      %p95 = scmp.eq.s32.totalorder %s22, 0
      %p96 = por %p94, %p95
      %s97 = ssub.s32 %s16, %s23
      %p98 = scmp.eq.s32.totalorder %s97, 0
      %s100 = sadd.s32 %s99, 1
      %s101 = scalar_select %p98, %s99, %s100
      %p104 = pneg %p98
      %p105 = scmp.eq.s32.totalorder %s16, 1
      %p106 = por %p104, %p105
      %p107 = scmp.ne.s32.totalorder %s99, %s102
      %p108 = scmp.eq.s32.totalorder %s16, 0
      %p109 = por %p107, %p108
      %p110 = scmp.ne.s32.totalorder %s99, %s102
      %p111 = scmp.eq.s32.totalorder %s21, 1
      %p112 = por %p110, %p111
      %p113 = scmp.ne.s32.totalorder %s102, %s103
      %p114 = scmp.eq.s32.totalorder %s21, 0
      %p115 = por %p113, %p114
      %p116 = scmp.ne.s32.totalorder %s102, %s103
      %p117 = scmp.eq.s32.totalorder %s22, 1
      %p118 = por %p116, %p117
      %p120 = scmp.ne.s32.totalorder %s103, %s119
      %p121 = scmp.eq.s32.totalorder %s22, 0
      %p122 = por %p120, %p121
      %p123 = scmp.le.s32.totalorder 1, %s16
      %p124 = scmp.lt.s32.totalorder %s16, 3
      %p125 = pnand %p123, %p124
      %p126 = pneg %p125
      // Predicated region
      $region9: #{topk_gate.1} parent=5 // pred_check
        _
      $region10: #{topk_gate.1} parent=5 // pred_check_branch
        %128 = sbr.rel (%p125) target = $region12
      $region11: #{topk_gate.1} parent=5 // pred_region
        %s129 = ssub.s32 %s16, 1
        // Predicated region
        $region13: #{topk_gate.1} parent=11 // pred_check
          %p130 = pneg %p63
        $region14: #{topk_gate.1} parent=11 // pred_check_branch
          %132 = sbr.rel (%p130) target = $region16
        $region15: #{topk_gate.1} parent=11 // pred_region
          _
        $region16: #{topk_gate.1} parent=11 // pred_fallthru
          _
      $region12: #{topk_gate.1} parent=5 // pred_fallthru
        _
      %p133 = scmp.lt.s32.totalorder %s16, 2
      // Predicated region
      $region17: #{topk_gate.1} parent=5 // pred_check
        %p134 = pneg %p133
      $region18: #{topk_gate.1} parent=5 // pred_check_branch
        %136 = sbr.rel (%p134) target = $region20
      $region19: #{topk_gate.1} parent=5 // pred_region
        // Predicated region
        $region21: #{topk_gate.1} parent=19 // pred_check
          %p137 = pneg %p36
        $region22: #{topk_gate.1} parent=19 // pred_check_branch
          %139 = sbr.rel (%p137) target = $region24
        $region23: #{topk_gate.1} parent=19 // pred_region
          %s140 = smul.u32 16, %s16
          %p141 = scmp.lt.s32.totalorder %s140, 31
          %s142 = scalar_select %p141, %s140, 31
          %s143 = smul.addr %s142, 4
          %s144 = scalar_lea.vmem %s0, %s143
          %s145 = smul.u32 16, %s16
        $region24: #{topk_gate.1} parent=19 // pred_fallthru
          _
      $region20: #{topk_gate.1} parent=5 // pred_fallthru
        _
      %p146 = scmp.le.s32.totalorder 1, %s16
      %p147 = scmp.lt.s32.totalorder %s16, 3
      %p148 = pnand %p146, %p147
      %p149 = pneg %p148
      // Predicated region
      $region25: #{topk_gate.1} parent=5 // pred_check
        _
      $region26: #{topk_gate.1} parent=5 // pred_check_branch
        %151 = sbr.rel (%p148) target = $region28
      $region27: #{topk_gate.1} parent=5 // pred_region
        %s152 = ssub.s32 %s16, 1
        %s153 = smul.u32 16, %s21
        %p154 = scmp.lt.s32.totalorder %s153, 31
        %s155 = scalar_select %p154, %s153, 31
        %s156 = smul.addr %s155, 4
        %s157 = scalar_lea.vmem %s0, %s156
        %p158 = pneg %p42
        %p159 = pneg %p39
        %p160 = pneg %p63
        %p161 = pneg %p60
        %p162 = pneg %p89
        %p163 = pneg %p86
        %s164 = sand.u32 %s76, 1
        %s165 = scalar_lea.sflag [#allocation3], %s164
        %s166 = sand.u32 %s76, 1
        %s167 = scalar_lea.vmem [#allocation2], %s166
        %p168 = pneg %p115
        %p169 = pneg %p112
        %s170 = sand.u32 %s102, 1
        %s171 = scalar_lea.sflag [#allocation5], %s170
        %s172 = sand.u32 %s102, 1
        %s173 = scalar_lea.vmem [#allocation4], %s172
        %s174 = smul.u32 16, %s21
        %p175 = scmp.lt.s32.totalorder %s174, 31
        %s176 = scalar_select %p175, %s174, 31
        %s177 = smul.addr %s176, 4
        %s178 = scalar_lea.vmem %s0, %s177
        %s179 = smul.u32 16, %s21
        %v180 = vld [vmem:[%s178] sm:$0xf]
        %v181 = vld [vmem:[%s178 + $0x4] sm:$0xf]
        %v182 = vld [vmem:[%s178 + $0x8] sm:$0xf]
        %v183 = vld [vmem:[%s178 + $0xc] sm:$0xf]
        %v184 = vld [vmem:[%s178 + $0x10] sm:$0xf]
        %v185 = vld [vmem:[%s178 + $0x14] sm:$0xf]
        %v186 = vld [vmem:[%s178 + $0x18] sm:$0xf]
        %v187 = vld [vmem:[%s178 + $0x1c] sm:$0xf]
        %v188 = vld [vmem:[%s178 + $0x20] sm:$0xf]
        %v189 = vld [vmem:[%s178 + $0x24] sm:$0xf]
        %v190 = vld [vmem:[%s178 + $0x28] sm:$0xf]
        %v191 = vld [vmem:[%s178 + $0x2c] sm:$0xf]
        %v192 = vld [vmem:[%s178 + $0x30] sm:$0xf]
        %v193 = vld [vmem:[%s178 + $0x34] sm:$0xf]
        %v194 = vld [vmem:[%s178 + $0x38] sm:$0xf]
        %v195 = vld [vmem:[%s178 + $0x3c] sm:$0xf]
        %v196 = vunpack.c.l.bf16 %v180
        %v197 = vunpack.c.l.bf16 %v181
        %v198 = vunpack.c.l.bf16 %v182
        %v199 = vunpack.c.l.bf16 %v183
        %v200 = vunpack.c.l.bf16 %v184
        %v201 = vunpack.c.l.bf16 %v185
        %v202 = vunpack.c.l.bf16 %v186
        %v203 = vunpack.c.l.bf16 %v187
        %v204 = vunpack.c.l.bf16 %v188
        %v205 = vunpack.c.l.bf16 %v189
        %v206 = vunpack.c.l.bf16 %v190
        %v207 = vunpack.c.l.bf16 %v191
        %v208 = vunpack.c.l.bf16 %v192
        %v209 = vunpack.c.l.bf16 %v193
        %v210 = vunpack.c.l.bf16 %v194
        %v211 = vunpack.c.l.bf16 %v195
        %v212 = vld [vmem:[%s1] sm:$0xff]
        %vm213 = vcmask 261120
        %v215 = vsel %vm213, %v212, 0
        %v218 = vsel %vm213, %v196, 0
        %v221 = vsel %vm213, %v197, 0
        %v224 = vsel %vm213, %v198, 0
        %v227 = vsel %vm213, %v199, 0
        %v230 = vsel %vm213, %v200, 0
        %v233 = vsel %vm213, %v201, 0
        %v236 = vsel %vm213, %v202, 0
        %v239 = vsel %vm213, %v203, 0
        %v242 = vsel %vm213, %v204, 0
        %v245 = vsel %vm213, %v205, 0
        %v248 = vsel %vm213, %v206, 0
        %v251 = vsel %vm213, %v207, 0
        %v254 = vsel %vm213, %v208, 0
        %v257 = vsel %vm213, %v209, 0
        %v260 = vsel %vm213, %v210, 0
        %v263 = vsel %vm213, %v211, 0
        %265 = vmatpush.xpose.msra.mxu0 %v263
        %266 = vmatpush.xpose.msra.mxu0 %v260
        %267 = vmatpush.xpose.msra.mxu0 %v257
        %268 = vmatpush.xpose.msra.mxu0 %v254
        %269 = vmatpush.xpose.msra.mxu0 %v251
        %270 = vmatpush.xpose.msra.mxu0 %v248
        %271 = vmatpush.xpose.msra.mxu0 %v245
        %272 = vmatpush.xpose.msra.mxu0 %v242
        %273 = vmatpush.xpose.msra.mxu0 %v239
        %274 = vmatpush.xpose.msra.mxu0 %v236
        %275 = vmatpush.xpose.msra.mxu0 %v233
        %276 = vmatpush.xpose.msra.mxu0 %v230
        %277 = vmatpush.xpose.msra.mxu0 %v227
        %278 = vmatpush.xpose.msra.mxu0 %v224
        %279 = vmatpush.xpose.msra.mxu0 %v221
        %280 = vmatpush.xpose.msra.mxu0 %v218
        %281 = vmatmul.f32.gmra.mxu0 %v215
        %v282 = vpop.f32.mrf.mxu0
        %v283 = vadd.f32 0.0, %v282
        %284 = vdwg.mxu0
        %v285 = vrot.slane %v283, 4
        %v286 = vmax.f32 %v283, %v285
        %v287 = vrot.slane %v286, 2
        %v288 = vmax.f32 %v286, %v287
        %v289 = vrot.slane %v288, 1
        %v290 = vmax.f32 %v288, %v289
        %v291 = vsub.f32 %v283, %v290
        %v292 = vmul.f32 %v291, 1.442695
        %v293 = vpow.pop %v292
        %v294 = vrot.slane %v293, 4
        %v295 = vadd.f32 %v293, %v294
        %v296 = vrot.slane %v295, 2
        %v297 = vadd.f32 %v295, %v296
        %v298 = vrot.slane %v297, 1
        %v299 = vadd.f32 %v297, %v298
        %v300 = vrcp.pop %v299
        %v301 = vmul.f32 %v299, %v300
        %v302 = vsub.f32 1.0, %v301
        %v303 = vmul.f32 %v300, %v302
        %v304 = vadd.f32 %v300, %v303
        %vm305 = vweird.f32 %v299
        %vm306 = vweird.f32 %v300
        %vm307 = vmor %vm305, %vm306
        %v308 = vsel %vm307, %v300, %v304
        %v309 = vand.u32 2147483647, %v299
        %vm310 = vcmp.eq.f32.partialorder %v309, 8.507059e+37
        %v311 = vand.u32 %v299, 2147483648
        %v312 = vor.u32 1.1754944e-38, %v311
        %v313 = vsel %vm310, %v312, %v308
        %v314 = vlaneseq
        %v315 = vshrl.u32 %v314, 7
        %v316 = vcvt.s32.f32 %v315
        %vm317 = vcmp.eq.f32.partialorder %v283, %v290
        %v318 = vsel %vm317, %v316, 8.0
        %v319 = vrot.slane %v318, 4
        %v320 = vmin.f32 %v318, %v319
        %v321 = vrot.slane %v320, 2
        %v322 = vmin.f32 %v320, %v321
        %v323 = vrot.slane %v322, 1
        %v324 = vmin.f32 %v322, %v323
        %vm325 = vcmp.eq.f32.partialorder %v316, %v324
        %v326 = vsel %vm325, %v293, 0.0
        %v327 = vrot.slane %v326, 4
        %v328 = vadd.f32 %v326, %v327
        %v329 = vrot.slane %v328, 2
        %v330 = vadd.f32 %v328, %v329
        %v331 = vrot.slane %v330, 1
        %v332 = vadd.f32 %v330, %v331
        %v333 = vmul.f32 %v332, %v313
        %v334 = vcvt.f32.s32.to.zero.pseudo %v324
        %335 = vst [vmem:[%s167] sm:$0x1] %v334
        %336 = vst [vmem:[%s173] sm:$0x1] %v333
        %s337 = sand.u32 %s76, 1
        %s338 = scalar_lea.sflag [#allocation3], %s337
        %s339 = sand.u32 %s76, 1
        %s340 = scalar_lea.vmem [#allocation2], %s339
        %s341 = sand.u32 %s102, 1
        %s342 = scalar_lea.sflag [#allocation5], %s341
        %s343 = sand.u32 %s102, 1
        %s344 = scalar_lea.vmem [#allocation4], %s343
        // Predicated region
        $region29: #{topk_gate.1} parent=27 // pred_check
          %p345 = pneg %p86
        $region30: #{topk_gate.1} parent=27 // pred_check_branch
          %347 = sbr.rel (%p345) target = $region32
        $region31: #{topk_gate.1} parent=27 // pred_region
          %349 = vsyncadd %s338, 0
          %s350 = scalar_lea.hbm %s2, %s21
          %s352 = sshll.u32 %s340, 4
          %s353 = int_to_ptr.vmem [resolvable:$true] %s352
          %s354 = sshll.u32 %s350, 4
          %s355 = int_to_ptr.hbm [resolvable:$true] %s354
          %357 = dma.vmem_to_hbm [thread:$0]  %s353, 16, %s355, %s338
        $region32: #{topk_gate.1} parent=27 // pred_fallthru
          _
        // Predicated region
        $region33: #{topk_gate.1} parent=27 // pred_check
          %p358 = pneg %p112
        $region34: #{topk_gate.1} parent=27 // pred_check_branch
          %360 = sbr.rel (%p358) target = $region36
        $region35: #{topk_gate.1} parent=27 // pred_region
          %362 = vsyncadd %s342, 0
          %s363 = scalar_lea.hbm %s3, %s21
          %s365 = sshll.u32 %s344, 4
          %s366 = int_to_ptr.vmem [resolvable:$true] %s365
          %s367 = sshll.u32 %s363, 4
          %s368 = int_to_ptr.hbm [resolvable:$true] %s367
          %370 = dma.vmem_to_hbm [thread:$0]  %s366, 16, %s368, %s342
        $region36: #{topk_gate.1} parent=27 // pred_fallthru
          _
      $region28: #{topk_gate.1} parent=5 // pred_fallthru
        _
      %p371 = scmp.le.s32.totalorder 2, %s16
      // Predicated region
      $region37: #{topk_gate.1} parent=5 // pred_check
        %p372 = pneg %p371
      $region38: #{topk_gate.1} parent=5 // pred_check_branch
        %374 = sbr.rel (%p372) target = $region40
      $region39: #{topk_gate.1} parent=5 // pred_region
        %s375 = ssub.s32 %s16, 2
        // Predicated region
        $region41: #{topk_gate.1} parent=39 // pred_check
          %p376 = pneg %p92
        $region42: #{topk_gate.1} parent=39 // pred_check_branch
          %378 = sbr.rel (%p376) target = $region44
        $region43: #{topk_gate.1} parent=39 // pred_region
          %s379 = sand.u32 %s77, 1
          %s380 = scalar_lea.sflag [#allocation3], %s379
          %s381 = sand.u32 %s77, 1
          %s382 = scalar_lea.vmem [#allocation2], %s381
          %384 = dma.done %s380, 16
        $region44: #{topk_gate.1} parent=39 // pred_fallthru
          _
        // Predicated region
        $region45: #{topk_gate.1} parent=39 // pred_check
          %p385 = pneg %p118
        $region46: #{topk_gate.1} parent=39 // pred_check_branch
          %387 = sbr.rel (%p385) target = $region48
        $region47: #{topk_gate.1} parent=39 // pred_region
          %s388 = sand.u32 %s103, 1
          %s389 = scalar_lea.sflag [#allocation5], %s388
          %s390 = sand.u32 %s103, 1
          %s391 = scalar_lea.vmem [#allocation4], %s390
          %393 = dma.done %s389, 16
        $region48: #{topk_gate.1} parent=39 // pred_fallthru
          _
      $region40: #{topk_gate.1} parent=5 // pred_fallthru
        _
    $region6: #{topk_gate.1} parent=1 // loop_footer
      %s20 = sadd.s32 1, %s16
    $region7: #{topk_gate.1} parent=1 // loop_footer_branch
      %15 = sbr.rel target = $region3
    $region8: #{topk_gate.1} parent=1 // loop_exit
      _
    %394 = vsyncpa [#allocation3], 1
    %s395 = scalar_lea.sflag [#allocation3], 1
    %396 = vsyncpa %s395, 1
    %397 = vsyncpa [#allocation5], 1
    %s398 = scalar_lea.sflag [#allocation5], 1
    %399 = vsyncpa %s398, 1

</llo_original>
